<compile_context>
chip_gen: v5e
topology: v5e:2x2
jax: 0.10.0
libtpu: 0.0.40
codegen_flags: <defaults>
</compile_context>

<pallas_src>
import functools

import jax
import jax.numpy as jnp
from jax.experimental import pallas as pl
from jax.experimental.pallas import tpu as pltpu


def _round_up(x: int, m: int) -> int:
    return ((x + m - 1) // m) * m


def tsfe_kernel(x_ref, w1_ref, b1_ref, w2_ref, b2_ref, out_ref):
    # x_ref:  (12, tb)  features, batch on the 128-lane axis
    # w1_ref: (16, 12), b1_ref: (16, 1)   -- PyTorch (out, in) layout
    # w2_ref: (16, 16), b2_ref: (16, 1)
    # out_ref:(16, tb)
    x_t = x_ref[...]
    g = jnp.dot(w1_ref[...], x_t, preferred_element_type=jnp.float32) + b1_ref[...]
    g = jnp.maximum(g, 0.0)
    o = jnp.dot(w2_ref[...], g, preferred_element_type=jnp.float32) + b2_ref[...]
    out_ref[...] = jnp.maximum(o, 0.0).astype(out_ref.dtype)


def _tsfe_pallas(x_t, w1, b1, w2, b2, *, tile_b):
    """x_t: (12, B) f32 with batch on the lane axis.  Returns (16, B) f32."""
    assert tile_b % 128 == 0 and tile_b > 0, "tile_b must be a positive multiple of 128"
    F, B = x_t.shape
    assert F == 12

    # Batches smaller than one 128-lane tile are padded up to exactly one tile.
    Bp = max(B, 128)
    if Bp != B:
        x_t = jnp.pad(x_t, ((0, 0), (0, Bp - B)))

    # Tile choice: as large as useful (amortise per-step pipeline overhead), but
    # guarantee >= 2 grid steps when there is enough work so both v7x TensorCores
    # stream the batch.  The last block may be partial; no tile padding is added.
    tb = min(tile_b, _round_up(Bp, 128))
    n_steps = pl.cdiv(Bp, tb)
    if n_steps == 1 and Bp >= 256:
        tb = _round_up(pl.cdiv(Bp, 2), 128)
        n_steps = pl.cdiv(Bp, tb)

    weight_bytes = sum(int(p.size) * p.dtype.itemsize for p in (w1, b1, w2, b2))
    cost = pl.CostEstimate(
        flops=2 * Bp * (16 * 12 + 16 * 16),
        transcendentals=0,
        bytes_accessed=Bp * (12 + 16) * 4 + weight_bytes,
    )

    out_t = pl.pallas_call(
        tsfe_kernel,
        out_shape=jax.ShapeDtypeStruct((16, Bp), jnp.float32),
        grid=(n_steps,),
        in_specs=[
            pl.BlockSpec((12, tb), lambda i: (0, i)),   # features tile (auto double-buffered)
            pl.BlockSpec((16, 12), lambda i: (0, 0)),   # w1 resident across grid steps
            pl.BlockSpec((16, 1), lambda i: (0, 0)),    # b1 resident
            pl.BlockSpec((16, 16), lambda i: (0, 0)),   # w2 resident
            pl.BlockSpec((16, 1), lambda i: (0, 0)),    # b2 resident
        ],
        out_specs=pl.BlockSpec((16, tb), lambda i: (0, i)),
        compiler_params=pltpu.CompilerParams(
            dimension_semantics=("parallel",),
        ),
        cost_estimate=cost,
    )(x_t, w1, b1, w2, b2)

    return out_t if Bp == B else out_t[:, :B]


@functools.partial(jax.jit, static_argnames=("tile_b",))
def tsfe_forward_lane_major(features_t, params, *, tile_b: int = 16384):
    """Zero-wrapper-copy entry point: features_t is (12, B) lane-major; returns (16, B)."""
    w1, b1, w2, b2 = params
    return _tsfe_pallas(features_t, w1, b1, w2, b2, tile_b=tile_b)


@functools.partial(jax.jit, static_argnames=("tile_b",))
def tsfe_forward(features, params, *, tile_b: int = 16384):
    """PyTorch-layout entry point: features (B, 12) -> (B, 16).
    Costs one transpose copy on each side of the kernel; prefer
    tsfe_forward_lane_major when the producer/consumer can use (12,B)/(16,B)."""
    w1, b1, w2, b2 = params
    B, F = features.shape
    assert F == 12
    out_t = _tsfe_pallas(features.T, w1, b1, w2, b2, tile_b=tile_b)
    return out_t.T


def _linear_init(kw, kb, fan_in, fan_out):
    # Deterministic PyTorch-style default init: U(-1/sqrt(fan_in), 1/sqrt(fan_in)).
    # Weights in PyTorch (out, in) layout; bias as an (out, 1) column.
    bound = 1.0 / float(fan_in) ** 0.5
    w = jax.random.uniform(kw, (fan_out, fan_in), jnp.float32, -bound, bound)
    b = jax.random.uniform(kb, (fan_out, 1), jnp.float32, -bound, bound)
    return w, b


def _reference(features, params):
    w1, b1, w2, b2 = params
    h = jnp.maximum(features @ w1.T + b1.T, 0.0)
    return jnp.maximum(h @ w2.T + b2.T, 0.0)


if __name__ == "__main__":
    key = jax.random.PRNGKey(0)
    ks = jax.random.split(key, 7)

    # network: Linear(12,16) -> ReLU -> Linear(16,16) -> ReLU
    # (ts_extractor weights intentionally omitted: dead code in the PyTorch forward.)
    w1, b1 = _linear_init(ks[0], ks[1], 12, 16)
    w2, b2 = _linear_init(ks[2], ks[3], 16, 16)
    params = (w1, b1, w2, b2)

    # 1) Small deterministic batch (B=2): exercises the <128-lane pad path.
    f_small = jax.random.normal(ks[4], (2, 12), jnp.float32)
    out_small = jax.block_until_ready(tsfe_forward(f_small, params))
    assert out_small.shape == (2, 16)
    assert jnp.allclose(out_small, _reference(f_small, params), atol=1e-5, rtol=1e-5)

    # 2) Ragged batch (B=1000, not a multiple of 128): 2 grid steps, partial last block.
    f_big = jax.random.normal(ks[5], (1000, 12), jnp.float32)
    out_big = jax.block_until_ready(tsfe_forward(f_big, params))
    assert out_big.shape == (1000, 16)
    assert jnp.allclose(out_big, _reference(f_big, params), atol=1e-5, rtol=1e-5)

    # 3) Lane-major zero-copy entry point (B=640): 2 parallel grid steps (v7x megacore).
    f_lm = jax.random.normal(ks[6], (12, 640), jnp.float32)
    out_lm = jax.block_until_ready(tsfe_forward_lane_major(f_lm, params))
    assert out_lm.shape == (16, 640)
    assert jnp.allclose(out_lm.T, _reference(f_lm.T, params), atol=1e-5, rtol=1e-5)

    print("KERNEL_OK")
</pallas_src>

<mosaic_0001>
module attributes {stable_mosaic.version = 11 : i64} {
  func.func @tsfe_kernel(%arg0: i32, %arg1: memref<12x128xf32, #tpu.memory_space<vmem>>, %arg2: memref<16x12xf32, #tpu.memory_space<vmem>>, %arg3: memref<16x1xf32, #tpu.memory_space<vmem>>, %arg4: memref<16x16xf32, #tpu.memory_space<vmem>>, %arg5: memref<16x1xf32, #tpu.memory_space<vmem>>, %arg6: memref<16x128xf32, #tpu.memory_space<vmem>>) attributes {dimension_semantics = [#tpu.dimension_semantics<parallel>], iteration_bounds = array<i64: 1>, scalar_prefetch = 0 : i64, scratch_operands = 0 : i64, tpu.core_type = #tpu.core_type<tc>, window_params = [{transform_indices = @transform_0, window_bounds = array<i64: 12, 128>}, {pipeline_mode = #tpu.pipeline_mode<synchronous>, transform_indices = @transform_1, window_bounds = array<i64: 16, 12>}, {pipeline_mode = #tpu.pipeline_mode<synchronous>, transform_indices = @transform_2, window_bounds = array<i64: 16, 1>}, {pipeline_mode = #tpu.pipeline_mode<synchronous>, transform_indices = @transform_3, window_bounds = array<i64: 16, 16>}, {pipeline_mode = #tpu.pipeline_mode<synchronous>, transform_indices = @transform_4, window_bounds = array<i64: 16, 1>}, {transform_indices = @transform_5, window_bounds = array<i64: 16, 128>}]} {
    %c0 = arith.constant 0 : index
    %c0_0 = arith.constant 0 : index
    %0 = vector.load %arg1[%c0, %c0_0] : memref<12x128xf32, #tpu.memory_space<vmem>>, vector<12x128xf32>
    %c0_1 = arith.constant 0 : index
    %c0_2 = arith.constant 0 : index
    %1 = vector.load %arg2[%c0_1, %c0_2] : memref<16x12xf32, #tpu.memory_space<vmem>>, vector<16x12xf32>
    %cst = arith.constant dense<0.000000e+00> : vector<16x128xf32>
    %2 = tpu.matmul %1, %0, %cst {dimension_numbers = #tpu.dot_dimension_numbers<[1], [0], [0], [1], [0, 0, 1, 1], [], []>} : vector<16x12xf32>, vector<12x128xf32>, vector<16x128xf32> -> vector<16x128xf32>
    %c0_3 = arith.constant 0 : index
    %c0_4 = arith.constant 0 : index
    %3 = vector.load %arg3[%c0_3, %c0_4] : memref<16x1xf32, #tpu.memory_space<vmem>>, vector<16x1xf32>
    %4 = vector.broadcast %3 : vector<16x1xf32> to vector<16x128xf32>
    %5 = arith.addf %2, %4 : vector<16x128xf32>
    %cst_5 = arith.constant 0.000000e+00 : f32
    %6 = vector.broadcast %cst_5 : f32 to vector<16x128xf32>
    %7 = arith.maximumf %5, %6 : vector<16x128xf32>
    %c0_6 = arith.constant 0 : index
    %c0_7 = arith.constant 0 : index
    %8 = vector.load %arg4[%c0_6, %c0_7] : memref<16x16xf32, #tpu.memory_space<vmem>>, vector<16x16xf32>
    %cst_8 = arith.constant dense<0.000000e+00> : vector<16x128xf32>
    %9 = tpu.matmul %8, %7, %cst_8 {dimension_numbers = #tpu.dot_dimension_numbers<[1], [0], [0], [1], [0, 0, 1, 1], [], []>} : vector<16x16xf32>, vector<16x128xf32>, vector<16x128xf32> -> vector<16x128xf32>
    %c0_9 = arith.constant 0 : index
    %c0_10 = arith.constant 0 : index
    %10 = vector.load %arg5[%c0_9, %c0_10] : memref<16x1xf32, #tpu.memory_space<vmem>>, vector<16x1xf32>
    %11 = vector.broadcast %10 : vector<16x1xf32> to vector<16x128xf32>
    %12 = arith.addf %9, %11 : vector<16x128xf32>
    %cst_11 = arith.constant 0.000000e+00 : f32
    %13 = vector.broadcast %cst_11 : f32 to vector<16x128xf32>
    %14 = arith.maximumf %12, %13 : vector<16x128xf32>
    %c0_12 = arith.constant 0 : index
    %c0_13 = arith.constant 0 : index
    %15 = vector.load %arg6[%c0_12, %c0_13] : memref<16x128xf32, #tpu.memory_space<vmem>>, vector<16x128xf32>
    tpu.vector_store %arg6[%c0_12, %c0_13], %14 {strides = array<i32>} : memref<16x128xf32, #tpu.memory_space<vmem>>, vector<16x128xf32>,
    return
  }
  func.func @transform_0(%arg0: i32) -> (i32, i32) {
    %c0_i32 = arith.constant 0 : i32
    %c0_i32_0 = arith.constant 0 : i32
    return %c0_i32, %arg0 : i32, i32
  }
  func.func @transform_1(%arg0: i32) -> (i32, i32) {
    %c0_i32 = arith.constant 0 : i32
    %c0_i32_0 = arith.constant 0 : i32
    %c0_i32_1 = arith.constant 0 : i32
    return %c0_i32, %c0_i32_0 : i32, i32
  }
  func.func @transform_2(%arg0: i32) -> (i32, i32) {
    %c0_i32 = arith.constant 0 : i32
    %c0_i32_0 = arith.constant 0 : i32
    %c0_i32_1 = arith.constant 0 : i32
    return %c0_i32, %c0_i32_0 : i32, i32
  }
  func.func @transform_3(%arg0: i32) -> (i32, i32) {
    %c0_i32 = arith.constant 0 : i32
    %c0_i32_0 = arith.constant 0 : i32
    %c0_i32_1 = arith.constant 0 : i32
    return %c0_i32, %c0_i32_0 : i32, i32
  }
  func.func @transform_4(%arg0: i32) -> (i32, i32) {
    %c0_i32 = arith.constant 0 : i32
    %c0_i32_0 = arith.constant 0 : i32
    %c0_i32_1 = arith.constant 0 : i32
    return %c0_i32, %c0_i32_0 : i32, i32
  }
  func.func @transform_5(%arg0: i32) -> (i32, i32) {
    %c0_i32 = arith.constant 0 : i32
    %c0_i32_0 = arith.constant 0 : i32
    return %c0_i32, %arg0 : i32, i32
  }
}

</mosaic_0001>

<llo_original>
// kernel: tsfe_forward.1
$region0: #{tsfe_forward.1}
  #allocation0 [shape = 'u32[]', space=smem, size = 0x4, offset = 0x4, fixed_abs, tag = 'smem constant byte address 0x4 - core index']
  #allocation1 [shape = 'u32[72,128]{1,0:T(1,128)}', space=vmem, size = 0x9000, scoped, tag = 'internal scratch']
  %s0 = inlined_call_operand.vmem [shape: f32[12,128], index: 0, kind: input, shape index: {}]
  %s1 = inlined_call_operand.vmem [shape: f32[16,12], index: 1, kind: input, shape index: {}]
  %s2 = inlined_call_operand.vmem [shape: f32[16,1], index: 2, kind: input, shape index: {}]
  %s3 = inlined_call_operand.vmem [shape: f32[16,16], index: 3, kind: input, shape index: {}]
  %s4 = inlined_call_operand.vmem [shape: f32[16,1], index: 4, kind: input, shape index: {}]
  %s5 = inlined_call_operand.vmem [shape: f32[16,128], index: 5, kind: output, shape index: {}]
  %s6 = sld [smem:[#allocation0]]
  $region30: #{tsfe_forward.1} parent=0
    _
  %s8 = ssub.s32 1, %s6
  %s9 = scalar_select 0, %s8, %s6
  // Predicated region
  $region2: #{tsfe_forward.1} parent=0 // pred_check
    _
  $region3: #{tsfe_forward.1} parent=0 // pred_check_branch
    %11 = sbr.rel (0) target = $region5
  $region4: #{tsfe_forward.1} parent=0 // pred_region
    _
  $region5: #{tsfe_forward.1} parent=0 // pred_fallthru
    _
  // Predicated region
  $region6: #{tsfe_forward.1} parent=0 // pred_check
    _
  $region7: #{tsfe_forward.1} parent=0 // pred_check_branch
    %13 = sbr.rel (0) target = $region9
  $region8: #{tsfe_forward.1} parent=0 // pred_region
    _
  $region9: #{tsfe_forward.1} parent=0 // pred_fallthru
    _
  // Predicated region
  $region10: #{tsfe_forward.1} parent=0 // pred_check
    _
  $region11: #{tsfe_forward.1} parent=0 // pred_check_branch
    %15 = sbr.rel (0) target = $region13
  $region12: #{tsfe_forward.1} parent=0 // pred_region
    _
  $region13: #{tsfe_forward.1} parent=0 // pred_fallthru
    _
  // Predicated region
  $region14: #{tsfe_forward.1} parent=0 // pred_check
    _
  $region15: #{tsfe_forward.1} parent=0 // pred_check_branch
    %17 = sbr.rel (0) target = $region17
  $region16: #{tsfe_forward.1} parent=0 // pred_region
    _
  $region17: #{tsfe_forward.1} parent=0 // pred_fallthru
    _
  // Predicated region
  $region18: #{tsfe_forward.1} parent=0 // pred_check
    _
  $region19: #{tsfe_forward.1} parent=0 // pred_check_branch
    %19 = sbr.rel (0) target = $region21
  $region20: #{tsfe_forward.1} parent=0 // pred_region
    _
  $region21: #{tsfe_forward.1} parent=0 // pred_fallthru
    _
  %v20 = vld [vmem:[%s0] sm:$0xff]
  %v21 = vld [vmem:[%s0 + $0x8] sm:$0xf]
  %v22 = vld [vmem:[%s1] sm:$0xff]
  %v23 = vld [vmem:[%s1 + $0x8] sm:$0xff]
  %v24 = vld [vmem:[%s2] sm:$0xff]
  %v25 = vld [vmem:[%s2 + $0x8] sm:$0xff]
  %27 = vset.pattern.permute.xlu0 0
  %28 = vperm.xlu0 %27, %v24
  %v29 = vpop.permute.xlu0 %28
  %32 = vset.pattern.permute.xlu0 0
  %33 = vperm.xlu0 %32, %v25
  %v34 = vpop.permute.xlu0 %33
  %vm36 = vcmask 97280
  %v38 = vsel %vm36, %v22, 0
  %v41 = vsel %vm36, %v23, 0
  %vm43 = vcmask 1043456
  %v45 = vsel %vm43, %v21, 0
  %47 = vmatpush.msra.mxu0 0.0
  %48 = vmatpush.msra.mxu0 0.0
  %49 = vmatpush.msra.mxu0 0.0
  %50 = vmatpush.msra.mxu0 0.0
  %51 = vmatpush.msra.mxu0 0.0
  %52 = vmatpush.msra.mxu0 0.0
  %53 = vmatpush.msra.mxu0 0.0
  %54 = vmatpush.msra.mxu0 0.0
  %55 = vmatpush.msra.mxu0 0.0
  %56 = vmatpush.msra.mxu0 0.0
  %57 = vmatpush.msra.mxu0 0.0
  %58 = vmatpush.msra.mxu0 0.0
  %59 = vmatpush.msra.mxu0 0.0
  %60 = vmatpush.msra.mxu0 0.0
  %61 = vmatpush.msra.mxu0 %v45
  %62 = vmatpush.msra.mxu0 %v20
  %63 = vmatmul.f32.gmra.mxu0 %v38
  %v64 = vpop.f32.mrf.mxu0
  %v65 = vadd.f32 %v29, %v64
  %66 = vmatmul.f32.gmra.mxu0 %v41
  %v67 = vpop.f32.mrf.mxu0
  %v68 = vadd.f32 %v34, %v67
  %69 = vdwg.mxu0
  %v70 = vmax.f32 %v65, 0.0
  %v71 = vmax.f32 %v68, 0.0
  %v72 = vld [vmem:[%s3] sm:$0xff]
  %v73 = vld [vmem:[%s3 + $0x8] sm:$0xff]
  %v74 = vld [vmem:[%s4] sm:$0xff]
  %v75 = vld [vmem:[%s4 + $0x8] sm:$0xff]
  %77 = vset.pattern.permute.xlu0 0
  %78 = vperm.xlu0 %77, %v74
  %v79 = vpop.permute.xlu0 %78
  %82 = vset.pattern.permute.xlu0 0
  %83 = vperm.xlu0 %82, %v75
  %v84 = vpop.permute.xlu0 %83
  %vm86 = vcmask 130048
  %v88 = vsel %vm86, %v72, 0
  %v91 = vsel %vm86, %v73, 0
  %93 = vmatpush.msra.mxu0 0.0
  %94 = vmatpush.msra.mxu0 0.0
  %95 = vmatpush.msra.mxu0 0.0
  %96 = vmatpush.msra.mxu0 0.0
  %97 = vmatpush.msra.mxu0 0.0
  %98 = vmatpush.msra.mxu0 0.0
  %99 = vmatpush.msra.mxu0 0.0
  %100 = vmatpush.msra.mxu0 0.0
  %101 = vmatpush.msra.mxu0 0.0
  %102 = vmatpush.msra.mxu0 0.0
  %103 = vmatpush.msra.mxu0 0.0
  %104 = vmatpush.msra.mxu0 0.0
  %105 = vmatpush.msra.mxu0 0.0
  %106 = vmatpush.msra.mxu0 0.0
  %107 = vmatpush.msra.mxu0 %v71
  %108 = vmatpush.msra.mxu0 %v70
  %109 = vmatmul.f32.gmra.mxu0 %v88
  %v110 = vpop.f32.mrf.mxu0
  %v111 = vadd.f32 %v79, %v110
  %112 = vmatmul.f32.gmra.mxu0 %v91
  %v113 = vpop.f32.mrf.mxu0
  %v114 = vadd.f32 %v84, %v113
  %115 = vdwg.mxu0
  %v116 = vmax.f32 %v111, 0.0
  %v117 = vmax.f32 %v114, 0.0
  %118 = vst [vmem:[%s5] sm:$0xff] %v116
  %119 = vst [vmem:[%s5 + $0x8] sm:$0xff] %v117
  // Predicated region
  $region22: #{tsfe_forward.1} parent=0 // pred_check
    _
  $region23: #{tsfe_forward.1} parent=0 // pred_check_branch
    %121 = sbr.rel (0) target = $region25
  $region24: #{tsfe_forward.1} parent=0 // pred_region
    _
  $region25: #{tsfe_forward.1} parent=0 // pred_fallthru
    _
  // Predicated region
  $region26: #{tsfe_forward.1} parent=0 // pred_check
    _
  $region27: #{tsfe_forward.1} parent=0 // pred_check_branch
    %123 = sbr.rel (0) target = $region29
  $region28: #{tsfe_forward.1} parent=0 // pred_region
    _
  $region29: #{tsfe_forward.1} parent=0 // pred_fallthru
    _

</llo_original>
